<compile_context>
chip_gen: v5e
topology: v5e:2x2
jax: 0.10.0
libtpu: 0.0.40
codegen_flags: <defaults>
</compile_context>

<pallas_src>
import functools

import jax
import jax.numpy as jnp
from jax.experimental import pallas as pl
from jax.experimental.pallas import tpu as pltpu


def _attention_kernel(x_ref, w1t_ref, b1_ref, w2_ref, b2_ref, o_ref, *,
                      num_instances):
    # x_ref  : (TB, N, D)    f32   instance features for TB batch elements
    # w1t_ref: (A, D)        bf16  transposed first-linear weight
    # b1_ref : (A, 1)        f32   first-linear bias (column)
    # w2_ref : (A, 1)        f32   second-linear weight (column)
    # b2_ref : (1,)          f32   second-linear bias (SMEM scalar)
    # o_ref  : (1, 1, TB*N)  f32   softmax attention weights, lane-dense
    N = num_instances
    TB, _, D = x_ref.shape
    M = TB * N

    # Leading-dim merge is a free view; bf16 cast happens in VMEM (no extra
    # HBM pass), MXU accumulates in f32.
    x2d = x_ref[...].reshape(M, D).astype(jnp.bfloat16)            # (M, D)

    # (A, D) @ (M, D)^T on the MXU -> hidden activations transposed (A, M).
    # TB*N sits on lanes, so the tanh / w2 multiply / A-reduction below are
    # lane-dense (the standard q @ k^T contraction pattern, no operand
    # transposes inside the kernel).
    h = jax.lax.dot_general(
        w1t_ref[...], x2d,
        dimension_numbers=(((1,), (1,)), ((), ())),
        preferred_element_type=jnp.float32)                        # (A, M)
    h = jnp.tanh(h + b1_ref[...])

    # Skinny A -> 1 projection off the MXU: VPU multiply + sublane reduce.
    s = jnp.sum(h * w2_ref[...], axis=0, keepdims=True) + b2_ref[0]  # (1, M)

    # Softmax over the instance axis (torch dim=1) = per N-sized lane chunk.
    if TB == 1:
        sb = s                                                     # (1, N)
    else:
        # Batch-folded path (large B, small N): small lane-split relayout of
        # TB*N f32 scores; the heavy (A, M) work above stays lane-dense.
        sb = s.reshape(TB, N)
    m = jnp.max(sb, axis=-1, keepdims=True)
    e = jnp.exp(sb - m)
    p = e / jnp.sum(e, axis=-1, keepdims=True)                     # exact norm
    o_ref[...] = p.reshape(1, 1, M)                                # dense store


def _default_vmem_limit_bytes():
    # Generation-aware scoped-VMEM request: 64 MiB on v5e/v6e (128 MiB VMEM),
    # ~70% of capacity on v7x (64 MiB VMEM) to leave compiler headroom.
    try:
        cap = int(pltpu.get_tpu_info().vmem_capacity_bytes)
    except Exception:
        cap = 64 * 1024 * 1024  # conservative (v7x-sized) fallback
    return int(min(64 * 1024 * 1024, cap * 7 // 10))


def _pick_batch_block(B, N, D, vmem_limit_bytes):
    # Fold batch elements into one grid step so each MXU call sees a few
    # hundred rows, subject to:
    #  * the f32 x block fitting a per-block VMEM budget (double-buffered by
    #    the pipeline, plus the in-kernel bf16 copy and (A, M) activations),
    #  * keeping the grid >= 2 steps when B > 1 (v7x two-TensorCore sharding
    #    and HBM->VMEM DMA overlapping compute of the previous step).
    bytes_per_row = D * 4                       # f32 rows streamed from HBM
    budget = max(vmem_limit_bytes // 4, 1 << 20)
    max_rows = max(budget // bytes_per_row, 1)
    target_rows = 512                           # amortize MXU fill/drain + step overhead
    tb = 1
    for d in range(1, B + 1):
        if B % d != 0:
            continue
        if d > 1 and B // d < 2:                # keep >= 2 grid steps
            break
        if d * N > max_rows:                    # stay inside VMEM budget
            break
        tb = d
        if d * N >= target_rows:                # big enough; stop growing
            break
    return tb


def attention_forward(x, w1, b1, w2, b2, *, batch_block=None,
                      vmem_limit_bytes=None):
    """softmax(tanh(x @ w1 + b1) @ w2 + b2, axis=1) for x of shape (B, N, D)."""
    B, N, D = x.shape
    A = w1.shape[1]

    if vmem_limit_bytes is None:
        vmem_limit_bytes = _default_vmem_limit_bytes()
    if batch_block is None:
        batch_block = _pick_batch_block(B, N, D, vmem_limit_bytes)
    TB = batch_block
    assert B % TB == 0, "batch_block must divide B"
    num_blocks = B // TB

    # One-time, tiny parameter plumbing (not per-element passes over x):
    # transpose w1 so the kernel matmul needs no in-kernel operand transpose;
    # biases / w2 as (A, 1) columns matching the (A, TB*N) hidden layout.
    x_f32 = jnp.asarray(x, jnp.float32)                       # no-op if already f32
    w1_t = jnp.asarray(w1, jnp.float32).T.astype(jnp.bfloat16)  # (A, D)
    b1_col = jnp.asarray(b1, jnp.float32).reshape(A, 1)
    w2_col = jnp.asarray(w2, jnp.float32).reshape(A, 1)
    b2_s = jnp.asarray(b2, jnp.float32).reshape(1)

    kernel = functools.partial(_attention_kernel, num_instances=N)

    out = pl.pallas_call(
        kernel,
        out_shape=jax.ShapeDtypeStruct((num_blocks, 1, TB * N), jnp.float32),
        grid_spec=pltpu.PrefetchScalarGridSpec(
            num_scalar_prefetch=0,
            grid=(num_blocks,),
            in_specs=[
                # Block last-two dims always equal the full array dims -> legal
                # for any N (no (8,128) divisibility requirement triggered).
                pl.BlockSpec((TB, N, D), lambda b: (b, 0, 0)),       # x
                pl.BlockSpec((A, D), lambda b: (0, 0)),              # w1^T
                pl.BlockSpec((A, 1), lambda b: (0, 0)),              # b1
                pl.BlockSpec((A, 1), lambda b: (0, 0)),              # w2
                pl.BlockSpec(memory_space=pltpu.MemorySpace.SMEM),   # b2
            ],
            out_specs=pl.BlockSpec((1, 1, TB * N), lambda b: (b, 0, 0)),
        ),
        compiler_params=pltpu.CompilerParams(
            dimension_semantics=("parallel",),
            vmem_limit_bytes=vmem_limit_bytes,
        ),
    )(x_f32, w1_t, b1_col, w2_col, b2_s)

    # Lane-dense kernel output (num_blocks, 1, TB*N) -> PyTorch-shaped (B, N, 1).
    return out.reshape(B, N, 1)


if __name__ == "__main__":
    # Small shapes: batch=2, instances(seq)=8, input_dim=32, attention_dim=16
    B, N, D, A = 2, 8, 32, 16

    key = jax.random.PRNGKey(0)
    kx, kw1, kb1, kw2, kb2 = jax.random.split(key, 5)

    x = jax.random.normal(kx, (B, N, D), dtype=jnp.float32)
    # Synthetic parameters (shapes follow nn.Linear(D, A), nn.Linear(A, 1))
    w1 = jax.random.normal(kw1, (D, A), dtype=jnp.float32) * 0.1
    b1 = jax.random.normal(kb1, (A,), dtype=jnp.float32) * 0.1
    w2 = jax.random.normal(kw2, (A, 1), dtype=jnp.float32) * 0.1
    b2 = jax.random.normal(kb2, (1,), dtype=jnp.float32) * 0.1

    out = attention_forward(x, w1, b1, w2, b2)
    out = jax.block_until_ready(out)

    # Pure-JAX f32 reference (same semantics as the PyTorch Attention module)
    ref_h = jnp.tanh(jnp.einsum("bnd,da->bna", x, w1) + b1)
    ref_s = jnp.einsum("bna,ao->bno", ref_h, w2) + b2
    ref = jax.nn.softmax(ref_s, axis=1)

    assert out.shape == (B, N, 1)
    # bf16 MXU operands (f32 accumulation) -> loosened tolerance vs f32 reference
    assert jnp.allclose(out, ref, atol=2e-2, rtol=2e-2)
    # Exact softmax normalization -> rows sum to 1 within f32 rounding
    assert jnp.allclose(jnp.sum(out, axis=1), 1.0, atol=1e-4)

    print("KERNEL_OK")
</pallas_src>

<mosaic_0001>
module attributes {stable_mosaic.version = 11 : i64} {
  func.func @_attention_kernel(%arg0: i32, %arg1: memref<1x8x32xf32, #tpu.memory_space<vmem>>, %arg2: memref<16x32xbf16, #tpu.memory_space<vmem>>, %arg3: memref<16x1xf32, #tpu.memory_space<vmem>>, %arg4: memref<16x1xf32, #tpu.memory_space<vmem>>, %arg5: memref<1xf32, #tpu.memory_space<smem>>, %arg6: memref<1x1x8xf32, #tpu.memory_space<vmem>>) attributes {dimension_semantics = [#tpu.dimension_semantics<parallel>], iteration_bounds = array<i64: 2>, scalar_prefetch = 0 : i64, scratch_operands = 0 : i64, tpu.core_type = #tpu.core_type<tc>, window_params = [{transform_indices = @transform_0, window_bounds = array<i64: 1, 8, 32>}, {pipeline_mode = #tpu.pipeline_mode<synchronous>, transform_indices = @transform_1, window_bounds = array<i64: 16, 32>}, {pipeline_mode = #tpu.pipeline_mode<synchronous>, transform_indices = @transform_2, window_bounds = array<i64: 16, 1>}, {pipeline_mode = #tpu.pipeline_mode<synchronous>, transform_indices = @transform_3, window_bounds = array<i64: 16, 1>}, {transform_indices = @transform_4, window_bounds = array<i64: 1>}, {transform_indices = @transform_5, window_bounds = array<i64: 1, 1, 8>}]} {
    %c0 = arith.constant 0 : index
    %c0_0 = arith.constant 0 : index
    %c0_1 = arith.constant 0 : index
    %0 = vector.load %arg1[%c0, %c0_0, %c0_1] : memref<1x8x32xf32, #tpu.memory_space<vmem>>, vector<1x8x32xf32>
    %1 = vector.shape_cast %0 : vector<1x8x32xf32> to vector<8x32xf32>
    %2 = arith.truncf %1 : vector<8x32xf32> to vector<8x32xbf16>
    %c0_2 = arith.constant 0 : index
    %c0_3 = arith.constant 0 : index
    %3 = vector.load %arg2[%c0_2, %c0_3] : memref<16x32xbf16, #tpu.memory_space<vmem>>, vector<16x32xbf16>
    %cst = arith.constant dense<0.000000e+00> : vector<16x8xf32>
    %4 = tpu.matmul %3, %2, %cst {dimension_numbers = #tpu.dot_dimension_numbers<[1], [1], [0], [0], [0, 0, 1, 0], [], []>} : vector<16x32xbf16>, vector<8x32xbf16>, vector<16x8xf32> -> vector<16x8xf32>
    %c0_4 = arith.constant 0 : index
    %c0_5 = arith.constant 0 : index
    %5 = vector.load %arg3[%c0_4, %c0_5] : memref<16x1xf32, #tpu.memory_space<vmem>>, vector<16x1xf32>
    %6 = vector.broadcast %5 : vector<16x1xf32> to vector<16x8xf32>
    %7 = arith.addf %4, %6 : vector<16x8xf32>
    %8 = math.tanh %7 : vector<16x8xf32>
    %c0_6 = arith.constant 0 : index
    %c0_7 = arith.constant 0 : index
    %9 = vector.load %arg4[%c0_6, %c0_7] : memref<16x1xf32, #tpu.memory_space<vmem>>, vector<16x1xf32>
    %10 = vector.broadcast %9 : vector<16x1xf32> to vector<16x8xf32>
    %11 = arith.mulf %8, %10 : vector<16x8xf32>
    %cst_8 = arith.constant dense<0.000000e+00> : vector<8xf32>
    %12 = vector.multi_reduction <add>, %11, %cst_8 [0] : vector<16x8xf32> to vector<8xf32>
    %13 = vector.shape_cast %12 : vector<8xf32> to vector<1x8xf32>
    %c0_9 = arith.constant 0 : index
    %14 = memref.load %arg5[%c0_9] : memref<1xf32, #tpu.memory_space<smem>>
    %15 = vector.broadcast %14 : f32 to vector<1x8xf32>
    %16 = arith.addf %13, %15 : vector<1x8xf32>
    %cst_10 = arith.constant dense<0xFF800000> : vector<1xf32>
    %17 = vector.multi_reduction <maximumf>, %16, %cst_10 [1] : vector<1x8xf32> to vector<1xf32>
    %18 = vector.shape_cast %17 : vector<1xf32> to vector<1x1xf32>
    %19 = vector.broadcast %18 : vector<1x1xf32> to vector<1x8xf32>
    %20 = arith.subf %16, %19 : vector<1x8xf32>
    %21 = math.exp %20 : vector<1x8xf32>
    %cst_11 = arith.constant dense<0.000000e+00> : vector<1xf32>
    %22 = vector.multi_reduction <add>, %21, %cst_11 [1] : vector<1x8xf32> to vector<1xf32>
    %23 = vector.shape_cast %22 : vector<1xf32> to vector<1x1xf32>
    %24 = vector.broadcast %23 : vector<1x1xf32> to vector<1x8xf32>
    %25 = arith.divf %21, %24 : vector<1x8xf32>
    %26 = vector.shape_cast %25 : vector<1x8xf32> to vector<1x1x8xf32>
    %c0_12 = arith.constant 0 : index
    %c0_13 = arith.constant 0 : index
    %c0_14 = arith.constant 0 : index
    %27 = vector.load %arg6[%c0_12, %c0_13, %c0_14] : memref<1x1x8xf32, #tpu.memory_space<vmem>>, vector<1x1x8xf32>
    tpu.vector_store %arg6[%c0_12, %c0_13, %c0_14], %26 {strides = array<i32>} : memref<1x1x8xf32, #tpu.memory_space<vmem>>, vector<1x1x8xf32>,
    return
  }
  func.func @transform_0(%arg0: i32) -> (i32, i32, i32) {
    %c0_i32 = arith.constant 0 : i32
    %c0_i32_0 = arith.constant 0 : i32
    %c0_i32_1 = arith.constant 0 : i32
    return %arg0, %c0_i32, %c0_i32_0 : i32, i32, i32
  }
  func.func @transform_1(%arg0: i32) -> (i32, i32) {
    %c0_i32 = arith.constant 0 : i32
    %c0_i32_0 = arith.constant 0 : i32
    %c0_i32_1 = arith.constant 0 : i32
    return %c0_i32, %c0_i32_0 : i32, i32
  }
  func.func @transform_2(%arg0: i32) -> (i32, i32) {
    %c0_i32 = arith.constant 0 : i32
    %c0_i32_0 = arith.constant 0 : i32
    %c0_i32_1 = arith.constant 0 : i32
    return %c0_i32, %c0_i32_0 : i32, i32
  }
  func.func @transform_3(%arg0: i32) -> (i32, i32) {
    %c0_i32 = arith.constant 0 : i32
    %c0_i32_0 = arith.constant 0 : i32
    %c0_i32_1 = arith.constant 0 : i32
    return %c0_i32, %c0_i32_0 : i32, i32
  }
  func.func @transform_4(%arg0: i32) -> i32 {
    %c0_i32 = arith.constant 0 : i32
    %c0_i32_0 = arith.constant 0 : i32
    return %c0_i32 : i32
  }
  func.func @transform_5(%arg0: i32) -> (i32, i32, i32) {
    %c0_i32 = arith.constant 0 : i32
    %c0_i32_0 = arith.constant 0 : i32
    %c0_i32_1 = arith.constant 0 : i32
    return %arg0, %c0_i32, %c0_i32_0 : i32, i32, i32
  }
}

</mosaic_0001>

<llo_original>
// kernel: tpu_custom_call.1
$region0: #{tpu_custom_call.1}
  #allocation0 [shape = 'u32[]', space=smem, size = 0x4, offset = 0x4, fixed_abs, tag = 'smem constant byte address 0x4 - core index']
  #allocation1 [shape = 'u32[72,128]{1,0:T(1,128)}', space=vmem, size = 0x9000, scoped, tag = 'internal scratch']
  #allocation2 [shape = 'f32[1]{0:T(128)S(6)}', space=smem, size = 0x200, scoped, tag = 'scoped memory for tpu_custom_call.1']
  %s0 = inlined_call_operand.vmem [shape: f32[2,8,32], index: 0, kind: input, shape index: {}]
  %s1 = inlined_call_operand.vmem [shape: bf16[16,32], index: 1, kind: input, shape index: {}]
  %s2 = inlined_call_operand.vmem [shape: f32[16,1], index: 2, kind: input, shape index: {}]
  %s3 = inlined_call_operand.vmem [shape: f32[16,1], index: 3, kind: input, shape index: {}]
  %s4 = inlined_call_operand.<no memory space> [shape: f32[1], index: 4, kind: input, shape index: {}]
  %s5 = inlined_call_operand.hbm [shape: f32[2,1,8], index: 5, kind: output, shape index: {}]
  %s6 = sld [smem:[#allocation0]]
  $region53: #{tpu_custom_call.1} parent=0
    _
  %s8 = ssub.s32 1, %s6
  %s9 = scalar_select 0, %s8, %s6
  %10 = sst [smem:[#allocation2]] %s4
  $region1: #{tpu_custom_call.1} parent=0
    #allocation3 [shape = 'u8[1024]{0}', space=vmem, size = 0x400, scoped, tag = 'output window, operand 0']
    #allocation4 [shape = 's32[2]{0}', space=sflag, size = 0x8, scoped, tag = 'scoped memory for tpu_custom_call.1']
    %11 = vsyncpa [#allocation4], 0
    %s12 = scalar_lea.sflag [#allocation4], 1
    %13 = vsyncpa %s12, 0
    loop: start=0, step=1, limit=4
    $region2: #{tpu_custom_call.1} parent=1 // loop_pre_header
      _
    $region3: #{tpu_custom_call.1} parent=1 // loop_header
      %s15 = sphi 0, %s19
      %p16 = scmp.ge.s32.totalorder %s15, 4
      %s25 = sphi 0, %s27
      %s28 = sphi 0, %s25
      %s29 = sphi 0, %s28
      %s45 = sphi 0, %s29
      %s49 = sphi 0, %s49
      %s51 = sphi 0, %s49
      %s52 = sphi 0, %s51
      %s66 = sphi 0, %s52
      %s70 = sphi 0, %s70
      %s72 = sphi 0, %s70
      %s73 = sphi 0, %s72
      %s87 = sphi 0, %s73
      %s91 = sphi 0, %s91
      %s93 = sphi 0, %s91
      %s94 = sphi 0, %s93
      %s108 = sphi 0, %s94
      %s112 = sphi 0, %s112
      %s114 = sphi 0, %s112
      %s115 = sphi 0, %s114
      %s129 = sphi 0, %s115
      %s135 = sphi 0, %s137
      %s138 = sphi 0, %s135
      %s139 = sphi 0, %s138
      %s155 = sphi 0, %s139
    $region4: #{tpu_custom_call.1} parent=1 // loop_header_branch
      %18 = sbr.rel (%p16) target = $region8
    $region5: #{tpu_custom_call.1} parent=1 // loop_body
      %s20 = ssub.s32 %s15, 1
      %s21 = ssub.s32 %s15, 2
      %s22 = sadd.s32 %s15, 1
      %s23 = ssub.s32 %s15, %s22
      %p24 = scmp.eq.s32.totalorder %s23, 0
      %s26 = sadd.s32 %s25, 1
      %s27 = scalar_select %p24, %s25, %s26
      %p30 = pneg %p24
      %p31 = scmp.eq.s32.totalorder %s15, 1
      %p32 = por %p30, %p31
      %p33 = scmp.ne.s32.totalorder %s25, %s28
      %p34 = scmp.eq.s32.totalorder %s15, 0
      %p35 = por %p33, %p34
      %p36 = scmp.ne.s32.totalorder %s25, %s28
      %p37 = scmp.eq.s32.totalorder %s20, 1
      %p38 = por %p36, %p37
      %p39 = scmp.ne.s32.totalorder %s28, %s29
      %p40 = scmp.eq.s32.totalorder %s20, 0
      %p41 = por %p39, %p40
      %p42 = scmp.ne.s32.totalorder %s28, %s29
      %p43 = scmp.eq.s32.totalorder %s21, 1
      %p44 = por %p42, %p43
      %p46 = scmp.ne.s32.totalorder %s29, %s45
      %p47 = scmp.eq.s32.totalorder %s21, 0
      %p48 = por %p46, %p47
      %s50 = sadd.s32 %s49, 1
      %p53 = scmp.eq.s32.totalorder %s15, 1
      %p54 = scmp.ne.s32.totalorder %s49, %s51
      %p55 = scmp.eq.s32.totalorder %s15, 0
      %p56 = por %p54, %p55
      %p57 = scmp.ne.s32.totalorder %s49, %s51
      %p58 = scmp.eq.s32.totalorder %s20, 1
      %p59 = por %p57, %p58
      %p60 = scmp.ne.s32.totalorder %s51, %s52
      %p61 = scmp.eq.s32.totalorder %s20, 0
      %p62 = por %p60, %p61
      %p63 = scmp.ne.s32.totalorder %s51, %s52
      %p64 = scmp.eq.s32.totalorder %s21, 1
      %p65 = por %p63, %p64
      %p67 = scmp.ne.s32.totalorder %s52, %s66
      %p68 = scmp.eq.s32.totalorder %s21, 0
      %p69 = por %p67, %p68
      %s71 = sadd.s32 %s70, 1
      %p74 = scmp.eq.s32.totalorder %s15, 1
      %p75 = scmp.ne.s32.totalorder %s70, %s72
      %p76 = scmp.eq.s32.totalorder %s15, 0
      %p77 = por %p75, %p76
      %p78 = scmp.ne.s32.totalorder %s70, %s72
      %p79 = scmp.eq.s32.totalorder %s20, 1
      %p80 = por %p78, %p79
      %p81 = scmp.ne.s32.totalorder %s72, %s73
      %p82 = scmp.eq.s32.totalorder %s20, 0
      %p83 = por %p81, %p82
      %p84 = scmp.ne.s32.totalorder %s72, %s73
      %p85 = scmp.eq.s32.totalorder %s21, 1
      %p86 = por %p84, %p85
      %p88 = scmp.ne.s32.totalorder %s73, %s87
      %p89 = scmp.eq.s32.totalorder %s21, 0
      %p90 = por %p88, %p89
      %s92 = sadd.s32 %s91, 1
      %p95 = scmp.eq.s32.totalorder %s15, 1
      %p96 = scmp.ne.s32.totalorder %s91, %s93
      %p97 = scmp.eq.s32.totalorder %s15, 0
      %p98 = por %p96, %p97
      %p99 = scmp.ne.s32.totalorder %s91, %s93
      %p100 = scmp.eq.s32.totalorder %s20, 1
      %p101 = por %p99, %p100
      %p102 = scmp.ne.s32.totalorder %s93, %s94
      %p103 = scmp.eq.s32.totalorder %s20, 0
      %p104 = por %p102, %p103
      %p105 = scmp.ne.s32.totalorder %s93, %s94
      %p106 = scmp.eq.s32.totalorder %s21, 1
      %p107 = por %p105, %p106
      %p109 = scmp.ne.s32.totalorder %s94, %s108
      %p110 = scmp.eq.s32.totalorder %s21, 0
      %p111 = por %p109, %p110
      %s113 = sadd.s32 %s112, 1
      %p116 = scmp.eq.s32.totalorder %s15, 1
      %p117 = scmp.ne.s32.totalorder %s112, %s114
      %p118 = scmp.eq.s32.totalorder %s15, 0
      %p119 = por %p117, %p118
      %p120 = scmp.ne.s32.totalorder %s112, %s114
      %p121 = scmp.eq.s32.totalorder %s20, 1
      %p122 = por %p120, %p121
      %p123 = scmp.ne.s32.totalorder %s114, %s115
      %p124 = scmp.eq.s32.totalorder %s20, 0
      %p125 = por %p123, %p124
      %p126 = scmp.ne.s32.totalorder %s114, %s115
      %p127 = scmp.eq.s32.totalorder %s21, 1
      %p128 = por %p126, %p127
      %p130 = scmp.ne.s32.totalorder %s115, %s129
      %p131 = scmp.eq.s32.totalorder %s21, 0
      %p132 = por %p130, %p131
      %s133 = ssub.s32 %s15, %s22
      %p134 = scmp.eq.s32.totalorder %s133, 0
      %s136 = sadd.s32 %s135, 1
      %s137 = scalar_select %p134, %s135, %s136
      %p140 = pneg %p134
      %p141 = scmp.eq.s32.totalorder %s15, 1
      %p142 = por %p140, %p141
      %p143 = scmp.ne.s32.totalorder %s135, %s138
      %p144 = scmp.eq.s32.totalorder %s15, 0
      %p145 = por %p143, %p144
      %p146 = scmp.ne.s32.totalorder %s135, %s138
      %p147 = scmp.eq.s32.totalorder %s20, 1
      %p148 = por %p146, %p147
      %p149 = scmp.ne.s32.totalorder %s138, %s139
      %p150 = scmp.eq.s32.totalorder %s20, 0
      %p151 = por %p149, %p150
      %p152 = scmp.ne.s32.totalorder %s138, %s139
      %p153 = scmp.eq.s32.totalorder %s21, 1
      %p154 = por %p152, %p153
      %p156 = scmp.ne.s32.totalorder %s139, %s155
      %p157 = scmp.eq.s32.totalorder %s21, 0
      %p158 = por %p156, %p157
      %p159 = scmp.le.s32.totalorder 1, %s15
      %p160 = scmp.lt.s32.totalorder %s15, 3
      %p161 = pnand %p159, %p160
      %p162 = pneg %p161
      // Predicated region
      $region9: #{tpu_custom_call.1} parent=5 // pred_check
        _
      $region10: #{tpu_custom_call.1} parent=5 // pred_check_branch
        %164 = sbr.rel (%p161) target = $region12
      $region11: #{tpu_custom_call.1} parent=5 // pred_region
        %s165 = ssub.s32 %s15, 1
        // Predicated region
        $region13: #{tpu_custom_call.1} parent=11 // pred_check
          %p166 = pneg %p62
        $region14: #{tpu_custom_call.1} parent=11 // pred_check_branch
          %168 = sbr.rel (%p166) target = $region16
        $region15: #{tpu_custom_call.1} parent=11 // pred_region
          _
        $region16: #{tpu_custom_call.1} parent=11 // pred_fallthru
          _
        // Predicated region
        $region17: #{tpu_custom_call.1} parent=11 // pred_check
          %p169 = pneg %p83
        $region18: #{tpu_custom_call.1} parent=11 // pred_check_branch
          %171 = sbr.rel (%p169) target = $region20
        $region19: #{tpu_custom_call.1} parent=11 // pred_region
          _
        $region20: #{tpu_custom_call.1} parent=11 // pred_fallthru
          _
        // Predicated region
        $region21: #{tpu_custom_call.1} parent=11 // pred_check
          %p172 = pneg %p104
        $region22: #{tpu_custom_call.1} parent=11 // pred_check_branch
          %174 = sbr.rel (%p172) target = $region24
        $region23: #{tpu_custom_call.1} parent=11 // pred_region
          _
        $region24: #{tpu_custom_call.1} parent=11 // pred_fallthru
          _
        // Predicated region
        $region25: #{tpu_custom_call.1} parent=11 // pred_check
          %p175 = pneg %p125
        $region26: #{tpu_custom_call.1} parent=11 // pred_check_branch
          %177 = sbr.rel (%p175) target = $region28
        $region27: #{tpu_custom_call.1} parent=11 // pred_region
          _
        $region28: #{tpu_custom_call.1} parent=11 // pred_fallthru
          _
      $region12: #{tpu_custom_call.1} parent=5 // pred_fallthru
        _
      %p178 = scmp.lt.s32.totalorder %s15, 2
      // Predicated region
      $region29: #{tpu_custom_call.1} parent=5 // pred_check
        %p179 = pneg %p178
      $region30: #{tpu_custom_call.1} parent=5 // pred_check_branch
        %181 = sbr.rel (%p179) target = $region32
      $region31: #{tpu_custom_call.1} parent=5 // pred_region
        // Predicated region
        $region33: #{tpu_custom_call.1} parent=31 // pred_check
          %p182 = pneg %p35
        $region34: #{tpu_custom_call.1} parent=31 // pred_check_branch
          %184 = sbr.rel (%p182) target = $region36
        $region35: #{tpu_custom_call.1} parent=31 // pred_region
          %p185 = scmp.lt.s32.totalorder %s15, 1
          %s186 = scalar_select %p185, %s15, 1
          %s187 = smul.addr %s186, 8
          %s188 = scalar_lea.vmem %s0, %s187
        $region36: #{tpu_custom_call.1} parent=31 // pred_fallthru
          _
      $region32: #{tpu_custom_call.1} parent=5 // pred_fallthru
        _
      %p189 = scmp.le.s32.totalorder 1, %s15
      %p190 = scmp.lt.s32.totalorder %s15, 3
      %p191 = pnand %p189, %p190
      %p192 = pneg %p191
      // Predicated region
      $region37: #{tpu_custom_call.1} parent=5 // pred_check
        _
      $region38: #{tpu_custom_call.1} parent=5 // pred_check_branch
        %194 = sbr.rel (%p191) target = $region40
      $region39: #{tpu_custom_call.1} parent=5 // pred_region
        %s195 = ssub.s32 %s15, 1
        %p196 = scmp.lt.s32.totalorder %s20, 1
        %s197 = scalar_select %p196, %s20, 1
        %s198 = smul.addr %s197, 8
        %s199 = scalar_lea.vmem %s0, %s198
        %p200 = pneg %p41
        %p201 = pneg %p38
        %p202 = pneg %p62
        %p203 = pneg %p59
        %p204 = pneg %p83
        %p205 = pneg %p80
        %p206 = pneg %p104
        %p207 = pneg %p101
        %p208 = pneg %p125
        %p209 = pneg %p122
        %p210 = pneg %p151
        %p211 = pneg %p148
        %s212 = sand.u32 %s138, 1
        %s213 = scalar_lea.sflag [#allocation4], %s212
        %s214 = sand.u32 %s138, 1
        %s215 = scalar_lea.vmem [#allocation3], %s214
        %p216 = scmp.lt.s32.totalorder %s20, 1
        %s217 = scalar_select %p216, %s20, 1
        %s218 = smul.addr %s217, 8
        %s219 = scalar_lea.vmem %s0, %s218
        %v221 = vld [vmem:[%s219] sm:$0xff]
        %v222 = vpack.c.bf16 %v221, %v221
        %v223 = vld [vmem:[%s1] sm:$0xf]
        %v224 = vld [vmem:[%s1 + $0x4] sm:$0xf]
        %v225 = vld [vmem:[%s2] sm:$0xff]
        %v226 = vld [vmem:[%s2 + $0x8] sm:$0xff]
        %228 = vset.pattern.permute.xlu0 0
        %229 = vperm.xlu0 %228, %v225
        %v230 = vpop.permute.xlu0 %229
        %233 = vset.pattern.permute.xlu0 0
        %234 = vperm.xlu0 %233, %v226
        %v235 = vpop.permute.xlu0 %234
        %v239 = vunpack.c.l.b16 %v223
        %v240 = vunpack.c.l.b16 %v224
        %v241 = vpack.c.b16 %v240, %v239
        %vm242 = vcmask 261120
        %v244 = vsel %vm242, %v241, 0
        %v247 = vsel %vm242, %v222, 0
        %249 = vmatpush.bf16.xpose.msra.mxu0 0
        %250 = vmatpush.bf16.xpose.msra.mxu0 0
        %251 = vmatpush.bf16.xpose.msra.mxu0 0
        %252 = vmatpush.bf16.xpose.msra.mxu0 0
        %253 = vmatpush.bf16.xpose.msra.mxu0 0
        %254 = vmatpush.bf16.xpose.msra.mxu0 0
        %255 = vmatpush.bf16.xpose.msra.mxu0 0
        %256 = vmatpush.bf16.xpose.msra.mxu0 %v247
        %257 = vmatmul.bf16.gmra.mxu0 %v244
        %v258 = vpop.f32.mrf.mxu0
        %v259 = vadd.f32 %v230, %v258
        %v260 = vpop.f32.mrf.mxu0
        %v261 = vadd.f32 %v235, %v260
        %262 = vdwg.mxu0
        %v263 = vtanh.pop %v259
        %v264 = vtanh.pop %v261
        %v265 = vld [vmem:[%s3] sm:$0xff]
        %v266 = vld [vmem:[%s3 + $0x8] sm:$0xff]
        %268 = vset.pattern.permute.xlu0 0
        %269 = vperm.xlu0 %268, %v265
        %v270 = vpop.permute.xlu0 %269
        %273 = vset.pattern.permute.xlu0 0
        %274 = vperm.xlu0 %273, %v266
        %v275 = vpop.permute.xlu0 %274
        %v277 = vmul.f32 %v263, %v270
        %v278 = vmul.f32 %v264, %v275
        %vm279 = vcmask 64512
        %v280 = vsel %vm279, %v277, 0.0
        %v281 = vsel %vm279, %v278, 0.0
        %v282 = vadd.f32 %v280, %v281
        %v283 = vrot.slane %v282, 4
        %v284 = vadd.f32 %v282, %v283
        %v285 = vrot.slane %v284, 2
        %v286 = vadd.f32 %v284, %v285
        %v287 = vrot.slane %v286, 1
        %v288 = vadd.f32 %v286, %v287
        %s289 = sld [smem:[#allocation2]]
        %v290 = vstv %s289
        %v291 = vadd.f32 %v288, %v290
        %v292 = vsel %vm279, %v291, -inf
        %293 = vmax.xlane.f32.xlu0 %v292
        %v294 = vpop.xlane.xlu0 %293
        %v295 = vsub.f32 %v291, %v294
        %v296 = vmul.f32 %v295, 1.442695
        %v297 = vpow.pop %v296
        %v298 = vsel %vm279, %v297, 0.0
        %299 = vadd.xlane.f32.xlu0 %v298
        %v300 = vpop.xlane.xlu0 %299
        %v301 = vrcp.pop %v300
        %v302 = vmul.f32 %v300, %v301
        %v303 = vsub.f32 1.0, %v302
        %v304 = vmul.f32 %v301, %v303
        %v305 = vadd.f32 %v301, %v304
        %vm306 = vweird.f32 %v300
        %vm307 = vweird.f32 %v301
        %vm308 = vmor %vm306, %vm307
        %v309 = vsel %vm308, %v301, %v305
        %v310 = vand.u32 2147483647, %v300
        %vm311 = vcmp.eq.f32.partialorder %v310, 8.507059e+37
        %v312 = vand.u32 %v300, 2147483648
        %v313 = vor.u32 1.1754944e-38, %v312
        %v314 = vsel %vm311, %v313, %v309
        %v315 = vmul.f32 %v297, %v314
        %vm316 = vcmask 57344
        %317 = vst.msk [vmem:[%s215] sm:$0x1] %vm316, %v315
        %s318 = sand.u32 %s138, 1
        %s319 = scalar_lea.sflag [#allocation4], %s318
        %s320 = sand.u32 %s138, 1
        %s321 = scalar_lea.vmem [#allocation3], %s320
        // Predicated region
        $region41: #{tpu_custom_call.1} parent=39 // pred_check
          %p322 = pneg %p148
        $region42: #{tpu_custom_call.1} parent=39 // pred_check_branch
          %324 = sbr.rel (%p322) target = $region44
        $region43: #{tpu_custom_call.1} parent=39 // pred_region
          %326 = vsyncadd %s319, 0
          %s327 = scalar_lea.hbm %s5, %s20
          %s329 = sshll.u32 %s321, 4
          %s330 = int_to_ptr.vmem [resolvable:$true] %s329
          %s331 = sshll.u32 %s327, 4
          %s332 = int_to_ptr.hbm [resolvable:$true] %s331
          %334 = dma.vmem_to_hbm [thread:$0]  %s330, 16, %s332, %s319
        $region44: #{tpu_custom_call.1} parent=39 // pred_fallthru
          _
      $region40: #{tpu_custom_call.1} parent=5 // pred_fallthru
        _
      %p335 = scmp.le.s32.totalorder 2, %s15
      // Predicated region
      $region45: #{tpu_custom_call.1} parent=5 // pred_check
        %p336 = pneg %p335
      $region46: #{tpu_custom_call.1} parent=5 // pred_check_branch
        %338 = sbr.rel (%p336) target = $region48
      $region47: #{tpu_custom_call.1} parent=5 // pred_region
        %s339 = ssub.s32 %s15, 2
        // Predicated region
        $region49: #{tpu_custom_call.1} parent=47 // pred_check
          %p340 = pneg %p154
        $region50: #{tpu_custom_call.1} parent=47 // pred_check_branch
          %342 = sbr.rel (%p340) target = $region52
        $region51: #{tpu_custom_call.1} parent=47 // pred_region
          %s343 = sand.u32 %s139, 1
          %s344 = scalar_lea.sflag [#allocation4], %s343
          %s345 = sand.u32 %s139, 1
          %s346 = scalar_lea.vmem [#allocation3], %s345
          %348 = dma.done %s344, 16
        $region52: #{tpu_custom_call.1} parent=47 // pred_fallthru
          _
      $region48: #{tpu_custom_call.1} parent=5 // pred_fallthru
        _
    $region6: #{tpu_custom_call.1} parent=1 // loop_footer
      %s19 = sadd.s32 1, %s15
    $region7: #{tpu_custom_call.1} parent=1 // loop_footer_branch
      %14 = sbr.rel target = $region3
    $region8: #{tpu_custom_call.1} parent=1 // loop_exit
      _
    %349 = vsyncpa [#allocation4], 1
    %s350 = scalar_lea.sflag [#allocation4], 1
    %351 = vsyncpa %s350, 1

</llo_original>
